<compile_context>
chip_gen: v7x
topology: tpu7x:2x2x1
jax: 0.10.0
libtpu: 0.0.40
codegen_flags: <defaults>
</compile_context>

<pallas_src>
import functools
import math

import jax
import jax.numpy as jnp
from jax.experimental import pallas as pl
from jax.experimental.pallas import tpu as pltpu


LN_EPS = 1e-5
LANE = 128
SUBLANE = 8


def _round_up(x, m):
    return ((x + m - 1) // m) * m


# ----------------------------------------------------------------------------
# Fused kernel: fc1 + layer_N hidden layers, activation resident in VMEM.
# ----------------------------------------------------------------------------
def _fused_mlp_kernel(x_ref, w1_ref, p1_ref, wh_ref, ph_ref, o_ref, act_ref,
                      *, n_hidden_layers, h_true):
    inv_h = 1.0 / float(h_true)

    def relu_layernorm(h, p):
        # h: (TB, Hp) f32 pre-activation (no bias yet)
        # p: (8, Hp) packed params: row 0 = bias, row 1 = gamma, row 2 = beta.
        h = jnp.maximum(h + p[0:1, :], 0.0)
        # Single-pass statistics.  Padded feature columns are exactly zero
        # (zero weight cols / bias / gamma), so they contribute nothing to
        # s1/s2; divide by the TRUE hidden size.
        s1 = jnp.sum(h, axis=-1, keepdims=True)
        s2 = jnp.sum(h * h, axis=-1, keepdims=True)
        mean = s1 * inv_h
        var = jnp.maximum(s2 * inv_h - mean * mean, 0.0)  # clamp vs cancellation
        hn = (h - mean) * jax.lax.rsqrt(var + LN_EPS)     # rsqrt -> EUP slot
        return hn * p[1:2, :] + p[2:3, :]

    # fc1: (TB, Dp) @ (Dp, Hp) on the MXU, f32 accumulation.
    h = jnp.dot(x_ref[...], w1_ref[...], preferred_element_type=jnp.float32)
    act_ref[...] = relu_layernorm(h, p1_ref[...])

    # fc2[i]: activation never leaves VMEM between layers.
    if n_hidden_layers > 0:
        def body(i, carry):
            hh = jnp.dot(act_ref[...], wh_ref[i],
                         preferred_element_type=jnp.float32)
            act_ref[...] = relu_layernorm(hh, ph_ref[i])
            return carry

        jax.lax.fori_loop(0, n_hidden_layers, body, 0, unroll=True)

    o_ref[...] = act_ref[...].astype(o_ref.dtype)


def _fused_mlp_call(x_p, w1, p1, wh, ph, *, hidden_size, layer_N, tile_b,
                    out_dtype):
    B_pad, D_in_p = x_p.shape
    H_p = w1.shape[1]
    n_eff = wh.shape[0]

    kernel = functools.partial(
        _fused_mlp_kernel, n_hidden_layers=layer_N, h_true=hidden_size)

    # NOTE: the full weight stack is kept resident in VMEM; for very large
    # hidden sizes (>= ~2048 f32 on v7x's 64 MiB VMEM) the weights would need a
    # K/N reduction grid axis ("arbitrary") plus a VMEM accumulator instead.
    return pl.pallas_call(
        kernel,
        out_shape=jax.ShapeDtypeStruct((B_pad, H_p), out_dtype),
        grid_spec=pltpu.PrefetchScalarGridSpec(
            num_scalar_prefetch=0,
            grid=(B_pad // tile_b,),
            in_specs=[
                pl.BlockSpec((tile_b, D_in_p), lambda i: (i, 0)),
                pl.BlockSpec((D_in_p, H_p), lambda i: (0, 0)),
                pl.BlockSpec((SUBLANE, H_p), lambda i: (0, 0)),
                pl.BlockSpec((n_eff, H_p, H_p), lambda i: (0, 0, 0)),
                pl.BlockSpec((n_eff, SUBLANE, H_p), lambda i: (0, 0, 0)),
            ],
            out_specs=pl.BlockSpec((tile_b, H_p), lambda i: (i, 0)),
            scratch_shapes=[pltpu.VMEM((tile_b, H_p), jnp.float32)],
        ),
        compiler_params=pltpu.CompilerParams(
            dimension_semantics=("parallel",)),
    )(x_p, w1, p1, wh, ph)


@functools.partial(
    jax.jit,
    static_argnames=("input_dim", "hidden_size", "layer_N", "tile_b_max"))
def mlp_layer_forward(packed, x, *, input_dim, hidden_size, layer_N,
                      tile_b_max=256):
    """packed: dict from pack_mlp_params; x: (B, input_dim) float32."""
    B, D = x.shape
    assert D == input_dim
    D_in_p = packed["w1"].shape[0]

    # Large MXU-shaped batch tile, capped so tiny batches use one grid point.
    tile_b = min(tile_b_max, _round_up(max(B, 1), SUBLANE))
    B_pad = _round_up(B, tile_b)

    # Zero-pad batch rows and feature columns (both sliced/ignored afterwards).
    x_p = jnp.zeros((B_pad, D_in_p), x.dtype).at[:B, :D].set(x)

    out_p = _fused_mlp_call(
        x_p, packed["w1"], packed["p1"], packed["wh"], packed["ph"],
        hidden_size=hidden_size, layer_N=layer_N, tile_b=tile_b,
        out_dtype=x.dtype)
    return out_p[:B, :hidden_size]


# ----------------------------------------------------------------------------
# Parameters (logical, PyTorch-equivalent) + packing for the kernel.
# ----------------------------------------------------------------------------
def orthogonal_weight(key, out_dim, in_dim, gain):
    """Orthogonal init (nn.init.orthogonal_ semantics), pre-transposed to
    (in_dim, out_dim) so the kernel computes x @ W."""
    w = jax.nn.initializers.orthogonal(scale=gain)(
        key, (out_dim, in_dim), jnp.float32)
    return w.T


def make_mlp_params(key, input_dim, hidden_size, layer_N):
    """Logical parameters for MLPLayer(use_orthogonal=True, use_ReLU=True)."""
    gain = math.sqrt(2.0)  # nn.init.calculate_gain('relu')
    keys = jax.random.split(key, 2)
    params = {
        "fc1": {
            "w": orthogonal_weight(keys[0], hidden_size, input_dim, gain),
            "b": jnp.zeros((hidden_size,), jnp.float32),
            "gamma": jnp.ones((hidden_size,), jnp.float32),
            "beta": jnp.zeros((hidden_size,), jnp.float32),
        },
        "fc2": [],
    }
    # get_clones deep-copies fc_h => all fc2 layers start with identical weights.
    wh = orthogonal_weight(keys[1], hidden_size, hidden_size, gain)
    for _ in range(layer_N):
        params["fc2"].append({
            "w": wh,
            "b": jnp.zeros((hidden_size,), jnp.float32),
            "gamma": jnp.ones((hidden_size,), jnp.float32),
            "beta": jnp.zeros((hidden_size,), jnp.float32),
        })
    return params


def pack_mlp_params(params, input_dim, hidden_size, layer_N):
    """Pad to 128-lane multiples and stack the hidden layers for the kernel.

    Padded gamma/beta columns stay zero so padded activation lanes are exactly
    zero after every layer (keeps the LayerNorm statistics exact)."""
    D_in_p = _round_up(input_dim, LANE)
    H_p = _round_up(hidden_size, LANE)

    def pad_w(w, rows, cols):
        out = jnp.zeros((rows, cols), jnp.float32)
        return out.at[:w.shape[0], :w.shape[1]].set(w)

    def pack_pgb(p):
        out = jnp.zeros((SUBLANE, H_p), jnp.float32)
        out = out.at[0, :hidden_size].set(p["b"])
        out = out.at[1, :hidden_size].set(p["gamma"])
        out = out.at[2, :hidden_size].set(p["beta"])
        return out

    n_eff = max(layer_N, 1)
    wh = jnp.zeros((n_eff, H_p, H_p), jnp.float32)
    ph = jnp.zeros((n_eff, SUBLANE, H_p), jnp.float32)
    for i, p in enumerate(params["fc2"]):
        wh = wh.at[i].set(pad_w(p["w"], H_p, H_p))
        ph = ph.at[i].set(pack_pgb(p))

    return {
        "w1": pad_w(params["fc1"]["w"], D_in_p, H_p),
        "p1": pack_pgb(params["fc1"]),
        "wh": wh,
        "ph": ph,
    }


# ----------------------------------------------------------------------------
# Pure-JAX reference (two-pass LayerNorm) for correctness checking.
# ----------------------------------------------------------------------------
def _reference_forward(params, x):
    def block(p, x):
        h = x @ p["w"] + p["b"]
        h = jnp.maximum(h, 0.0)
        mean = jnp.mean(h, axis=-1, keepdims=True)
        var = jnp.mean(jnp.square(h - mean), axis=-1, keepdims=True)
        hn = (h - mean) / jnp.sqrt(var + LN_EPS)
        return hn * p["gamma"] + p["beta"]

    x = block(params["fc1"], x)
    for p in params["fc2"]:
        x = block(p, x)
    return x


if __name__ == "__main__":
    input_dim = 32
    hidden_size = 64
    layer_N = 2
    batch = 16

    key = jax.random.PRNGKey(0)
    k_params, k_x = jax.random.split(key)
    params = make_mlp_params(k_params, input_dim, hidden_size, layer_N)
    packed = pack_mlp_params(params, input_dim, hidden_size, layer_N)
    x = jax.random.normal(k_x, (batch, input_dim), jnp.float32)

    out = mlp_layer_forward(packed, x, input_dim=input_dim,
                            hidden_size=hidden_size, layer_N=layer_N)
    out = jax.block_until_ready(out)

    ref = _reference_forward(params, x)
    assert out.shape == (batch, hidden_size)
    assert jnp.allclose(out, ref, atol=2e-5, rtol=2e-5), "mismatch vs reference"

    print("KERNEL_OK")
</pallas_src>

<mosaic_0001>
module attributes {stable_mosaic.version = 11 : i64} {
  func.func @_fused_mlp_kernel(%arg0: i32, %arg1: memref<16x128xf32, #tpu.memory_space<vmem>>, %arg2: memref<128x128xf32, #tpu.memory_space<vmem>>, %arg3: memref<8x128xf32, #tpu.memory_space<vmem>>, %arg4: memref<2x128x128xf32, #tpu.memory_space<vmem>>, %arg5: memref<2x8x128xf32, #tpu.memory_space<vmem>>, %arg6: memref<16x128xf32, #tpu.memory_space<vmem>>, %arg7: memref<16x128xf32, #tpu.memory_space<vmem>>) attributes {dimension_semantics = [#tpu.dimension_semantics<parallel>], iteration_bounds = array<i64: 1>, scalar_prefetch = 0 : i64, scratch_operands = 1 : i64, tpu.core_type = #tpu.core_type<tc>, window_params = [{transform_indices = @transform_0, window_bounds = array<i64: 16, 128>}, {pipeline_mode = #tpu.pipeline_mode<synchronous>, transform_indices = @transform_1, window_bounds = array<i64: 128, 128>}, {pipeline_mode = #tpu.pipeline_mode<synchronous>, transform_indices = @transform_2, window_bounds = array<i64: 8, 128>}, {pipeline_mode = #tpu.pipeline_mode<synchronous>, transform_indices = @transform_3, window_bounds = array<i64: 2, 128, 128>}, {pipeline_mode = #tpu.pipeline_mode<synchronous>, transform_indices = @transform_4, window_bounds = array<i64: 2, 8, 128>}, {transform_indices = @transform_5, window_bounds = array<i64: 16, 128>}]} {
    %c0 = arith.constant 0 : index
    %c0_0 = arith.constant 0 : index
    %0 = vector.load %arg1[%c0, %c0_0] : memref<16x128xf32, #tpu.memory_space<vmem>>, vector<16x128xf32>
    %c0_1 = arith.constant 0 : index
    %c0_2 = arith.constant 0 : index
    %1 = vector.load %arg2[%c0_1, %c0_2] : memref<128x128xf32, #tpu.memory_space<vmem>>, vector<128x128xf32>
    %cst = arith.constant dense<0.000000e+00> : vector<16x128xf32>
    %2 = tpu.matmul %0, %1, %cst {dimension_numbers = #tpu.dot_dimension_numbers<[1], [0], [0], [1], [0, 0, 1, 1], [], []>} : vector<16x128xf32>, vector<128x128xf32>, vector<16x128xf32> -> vector<16x128xf32>
    %c0_3 = arith.constant 0 : index
    %c0_4 = arith.constant 0 : index
    %3 = vector.load %arg3[%c0_3, %c0_4] : memref<8x128xf32, #tpu.memory_space<vmem>>, vector<8x128xf32>
    %4 = vector.extract_strided_slice %3 {offsets = [0, 0], sizes = [1, 128], strides = [1, 1]} : vector<8x128xf32> to vector<1x128xf32>
    %5 = vector.broadcast %4 : vector<1x128xf32> to vector<16x128xf32>
    %6 = arith.addf %2, %5 : vector<16x128xf32>
    %cst_5 = arith.constant 0.000000e+00 : f32
    %7 = vector.broadcast %cst_5 : f32 to vector<16x128xf32>
    %8 = arith.maximumf %6, %7 : vector<16x128xf32>
    %cst_6 = arith.constant dense<0.000000e+00> : vector<16xf32>
    %9 = vector.multi_reduction <add>, %8, %cst_6 [1] : vector<16x128xf32> to vector<16xf32>
    %10 = vector.shape_cast %9 : vector<16xf32> to vector<16x1xf32>
    %11 = arith.mulf %8, %8 : vector<16x128xf32>
    %cst_7 = arith.constant dense<0.000000e+00> : vector<16xf32>
    %12 = vector.multi_reduction <add>, %11, %cst_7 [1] : vector<16x128xf32> to vector<16xf32>
    %13 = vector.shape_cast %12 : vector<16xf32> to vector<16x1xf32>
    %cst_8 = arith.constant 1.562500e-02 : f32
    %14 = vector.broadcast %cst_8 : f32 to vector<16x1xf32>
    %15 = arith.mulf %10, %14 : vector<16x1xf32>
    %cst_9 = arith.constant 1.562500e-02 : f32
    %16 = vector.broadcast %cst_9 : f32 to vector<16x1xf32>
    %17 = arith.mulf %13, %16 : vector<16x1xf32>
    %18 = arith.mulf %15, %15 : vector<16x1xf32>
    %19 = arith.subf %17, %18 : vector<16x1xf32>
    %cst_10 = arith.constant 0.000000e+00 : f32
    %20 = vector.broadcast %cst_10 : f32 to vector<16x1xf32>
    %21 = arith.maximumf %19, %20 : vector<16x1xf32>
    %22 = vector.broadcast %15 : vector<16x1xf32> to vector<16x128xf32>
    %23 = arith.subf %8, %22 : vector<16x128xf32>
    %cst_11 = arith.constant 9.99999974E-6 : f32
    %24 = vector.broadcast %cst_11 : f32 to vector<16x1xf32>
    %25 = arith.addf %21, %24 : vector<16x1xf32>
    %26 = math.rsqrt %25 : vector<16x1xf32>
    %27 = vector.broadcast %26 : vector<16x1xf32> to vector<16x128xf32>
    %28 = arith.mulf %23, %27 : vector<16x128xf32>
    %29 = vector.extract_strided_slice %3 {offsets = [1, 0], sizes = [1, 128], strides = [1, 1]} : vector<8x128xf32> to vector<1x128xf32>
    %30 = vector.broadcast %29 : vector<1x128xf32> to vector<16x128xf32>
    %31 = arith.mulf %28, %30 : vector<16x128xf32>
    %32 = vector.extract_strided_slice %3 {offsets = [2, 0], sizes = [1, 128], strides = [1, 1]} : vector<8x128xf32> to vector<1x128xf32>
    %33 = vector.broadcast %32 : vector<1x128xf32> to vector<16x128xf32>
    %34 = arith.addf %31, %33 : vector<16x128xf32>
    %c0_12 = arith.constant 0 : index
    %c0_13 = arith.constant 0 : index
    %35 = vector.load %arg7[%c0_12, %c0_13] : memref<16x128xf32, #tpu.memory_space<vmem>>, vector<16x128xf32>
    tpu.vector_store %arg7[%c0_12, %c0_13], %34 {strides = array<i32>} : memref<16x128xf32, #tpu.memory_space<vmem>>, vector<16x128xf32>,
    %c0_i32 = arith.constant 0 : i32
    %c0_14 = arith.constant 0 : index
    %c0_15 = arith.constant 0 : index
    %36 = vector.load %arg7[%c0_14, %c0_15] : memref<16x128xf32, #tpu.memory_space<vmem>>, vector<16x128xf32>
    %37 = arith.index_cast %c0_i32 : i32 to index
    %c0_16 = arith.constant 0 : index
    %c0_17 = arith.constant 0 : index
    %38 = vector.load %arg4[%37, %c0_16, %c0_17] : memref<2x128x128xf32, #tpu.memory_space<vmem>>, vector<1x128x128xf32>
    %39 = vector.shape_cast %38 : vector<1x128x128xf32> to vector<128x128xf32>
    %cst_18 = arith.constant dense<0.000000e+00> : vector<16x128xf32>
    %40 = tpu.matmul %36, %39, %cst_18 {dimension_numbers = #tpu.dot_dimension_numbers<[1], [0], [0], [1], [0, 0, 1, 1], [], []>} : vector<16x128xf32>, vector<128x128xf32>, vector<16x128xf32> -> vector<16x128xf32>
    %41 = arith.index_cast %c0_i32 : i32 to index
    %c0_19 = arith.constant 0 : index
    %c0_20 = arith.constant 0 : index
    %42 = vector.load %arg5[%41, %c0_19, %c0_20] : memref<2x8x128xf32, #tpu.memory_space<vmem>>, vector<1x8x128xf32>
    %43 = vector.shape_cast %42 : vector<1x8x128xf32> to vector<8x128xf32>
    %44 = vector.extract_strided_slice %43 {offsets = [0, 0], sizes = [1, 128], strides = [1, 1]} : vector<8x128xf32> to vector<1x128xf32>
    %45 = vector.broadcast %44 : vector<1x128xf32> to vector<16x128xf32>
    %46 = arith.addf %40, %45 : vector<16x128xf32>
    %cst_21 = arith.constant 0.000000e+00 : f32
    %47 = vector.broadcast %cst_21 : f32 to vector<16x128xf32>
    %48 = arith.maximumf %46, %47 : vector<16x128xf32>
    %cst_22 = arith.constant dense<0.000000e+00> : vector<16xf32>
    %49 = vector.multi_reduction <add>, %48, %cst_22 [1] : vector<16x128xf32> to vector<16xf32>
    %50 = vector.shape_cast %49 : vector<16xf32> to vector<16x1xf32>
    %51 = arith.mulf %48, %48 : vector<16x128xf32>
    %cst_23 = arith.constant dense<0.000000e+00> : vector<16xf32>
    %52 = vector.multi_reduction <add>, %51, %cst_23 [1] : vector<16x128xf32> to vector<16xf32>
    %53 = vector.shape_cast %52 : vector<16xf32> to vector<16x1xf32>
    %cst_24 = arith.constant 1.562500e-02 : f32
    %54 = vector.broadcast %cst_24 : f32 to vector<16x1xf32>
    %55 = arith.mulf %50, %54 : vector<16x1xf32>
    %cst_25 = arith.constant 1.562500e-02 : f32
    %56 = vector.broadcast %cst_25 : f32 to vector<16x1xf32>
    %57 = arith.mulf %53, %56 : vector<16x1xf32>
    %58 = arith.mulf %55, %55 : vector<16x1xf32>
    %59 = arith.subf %57, %58 : vector<16x1xf32>
    %cst_26 = arith.constant 0.000000e+00 : f32
    %60 = vector.broadcast %cst_26 : f32 to vector<16x1xf32>
    %61 = arith.maximumf %59, %60 : vector<16x1xf32>
    %62 = vector.broadcast %55 : vector<16x1xf32> to vector<16x128xf32>
    %63 = arith.subf %48, %62 : vector<16x128xf32>
    %cst_27 = arith.constant 9.99999974E-6 : f32
    %64 = vector.broadcast %cst_27 : f32 to vector<16x1xf32>
    %65 = arith.addf %61, %64 : vector<16x1xf32>
    %66 = math.rsqrt %65 : vector<16x1xf32>
    %67 = vector.broadcast %66 : vector<16x1xf32> to vector<16x128xf32>
    %68 = arith.mulf %63, %67 : vector<16x128xf32>
    %69 = vector.extract_strided_slice %43 {offsets = [1, 0], sizes = [1, 128], strides = [1, 1]} : vector<8x128xf32> to vector<1x128xf32>
    %70 = vector.broadcast %69 : vector<1x128xf32> to vector<16x128xf32>
    %71 = arith.mulf %68, %70 : vector<16x128xf32>
    %72 = vector.extract_strided_slice %43 {offsets = [2, 0], sizes = [1, 128], strides = [1, 1]} : vector<8x128xf32> to vector<1x128xf32>
    %73 = vector.broadcast %72 : vector<1x128xf32> to vector<16x128xf32>
    %74 = arith.addf %71, %73 : vector<16x128xf32>
    %c0_28 = arith.constant 0 : index
    %c0_29 = arith.constant 0 : index
    %75 = vector.load %arg7[%c0_28, %c0_29] : memref<16x128xf32, #tpu.memory_space<vmem>>, vector<16x128xf32>
    tpu.vector_store %arg7[%c0_28, %c0_29], %74 {strides = array<i32>} : memref<16x128xf32, #tpu.memory_space<vmem>>, vector<16x128xf32>,
    %c1_i32 = arith.constant 1 : i32
    %c0_30 = arith.constant 0 : index
    %c0_31 = arith.constant 0 : index
    %76 = vector.load %arg7[%c0_30, %c0_31] : memref<16x128xf32, #tpu.memory_space<vmem>>, vector<16x128xf32>
    %77 = arith.index_cast %c1_i32 : i32 to index
    %c0_32 = arith.constant 0 : index
    %c0_33 = arith.constant 0 : index
    %78 = vector.load %arg4[%77, %c0_32, %c0_33] : memref<2x128x128xf32, #tpu.memory_space<vmem>>, vector<1x128x128xf32>
    %79 = vector.shape_cast %78 : vector<1x128x128xf32> to vector<128x128xf32>
    %cst_34 = arith.constant dense<0.000000e+00> : vector<16x128xf32>
    %80 = tpu.matmul %76, %79, %cst_34 {dimension_numbers = #tpu.dot_dimension_numbers<[1], [0], [0], [1], [0, 0, 1, 1], [], []>} : vector<16x128xf32>, vector<128x128xf32>, vector<16x128xf32> -> vector<16x128xf32>
    %81 = arith.index_cast %c1_i32 : i32 to index
    %c0_35 = arith.constant 0 : index
    %c0_36 = arith.constant 0 : index
    %82 = vector.load %arg5[%81, %c0_35, %c0_36] : memref<2x8x128xf32, #tpu.memory_space<vmem>>, vector<1x8x128xf32>
    %83 = vector.shape_cast %82 : vector<1x8x128xf32> to vector<8x128xf32>
    %84 = vector.extract_strided_slice %83 {offsets = [0, 0], sizes = [1, 128], strides = [1, 1]} : vector<8x128xf32> to vector<1x128xf32>
    %85 = vector.broadcast %84 : vector<1x128xf32> to vector<16x128xf32>
    %86 = arith.addf %80, %85 : vector<16x128xf32>
    %cst_37 = arith.constant 0.000000e+00 : f32
    %87 = vector.broadcast %cst_37 : f32 to vector<16x128xf32>
    %88 = arith.maximumf %86, %87 : vector<16x128xf32>
    %cst_38 = arith.constant dense<0.000000e+00> : vector<16xf32>
    %89 = vector.multi_reduction <add>, %88, %cst_38 [1] : vector<16x128xf32> to vector<16xf32>
    %90 = vector.shape_cast %89 : vector<16xf32> to vector<16x1xf32>
    %91 = arith.mulf %88, %88 : vector<16x128xf32>
    %cst_39 = arith.constant dense<0.000000e+00> : vector<16xf32>
    %92 = vector.multi_reduction <add>, %91, %cst_39 [1] : vector<16x128xf32> to vector<16xf32>
    %93 = vector.shape_cast %92 : vector<16xf32> to vector<16x1xf32>
    %cst_40 = arith.constant 1.562500e-02 : f32
    %94 = vector.broadcast %cst_40 : f32 to vector<16x1xf32>
    %95 = arith.mulf %90, %94 : vector<16x1xf32>
    %cst_41 = arith.constant 1.562500e-02 : f32
    %96 = vector.broadcast %cst_41 : f32 to vector<16x1xf32>
    %97 = arith.mulf %93, %96 : vector<16x1xf32>
    %98 = arith.mulf %95, %95 : vector<16x1xf32>
    %99 = arith.subf %97, %98 : vector<16x1xf32>
    %cst_42 = arith.constant 0.000000e+00 : f32
    %100 = vector.broadcast %cst_42 : f32 to vector<16x1xf32>
    %101 = arith.maximumf %99, %100 : vector<16x1xf32>
    %102 = vector.broadcast %95 : vector<16x1xf32> to vector<16x128xf32>
    %103 = arith.subf %88, %102 : vector<16x128xf32>
    %cst_43 = arith.constant 9.99999974E-6 : f32
    %104 = vector.broadcast %cst_43 : f32 to vector<16x1xf32>
    %105 = arith.addf %101, %104 : vector<16x1xf32>
    %106 = math.rsqrt %105 : vector<16x1xf32>
    %107 = vector.broadcast %106 : vector<16x1xf32> to vector<16x128xf32>
    %108 = arith.mulf %103, %107 : vector<16x128xf32>
    %109 = vector.extract_strided_slice %83 {offsets = [1, 0], sizes = [1, 128], strides = [1, 1]} : vector<8x128xf32> to vector<1x128xf32>
    %110 = vector.broadcast %109 : vector<1x128xf32> to vector<16x128xf32>
    %111 = arith.mulf %108, %110 : vector<16x128xf32>
    %112 = vector.extract_strided_slice %83 {offsets = [2, 0], sizes = [1, 128], strides = [1, 1]} : vector<8x128xf32> to vector<1x128xf32>
    %113 = vector.broadcast %112 : vector<1x128xf32> to vector<16x128xf32>
    %114 = arith.addf %111, %113 : vector<16x128xf32>
    %c0_44 = arith.constant 0 : index
    %c0_45 = arith.constant 0 : index
    %115 = vector.load %arg7[%c0_44, %c0_45] : memref<16x128xf32, #tpu.memory_space<vmem>>, vector<16x128xf32>
    tpu.vector_store %arg7[%c0_44, %c0_45], %114 {strides = array<i32>} : memref<16x128xf32, #tpu.memory_space<vmem>>, vector<16x128xf32>,
    %c2_i32 = arith.constant 2 : i32
    %c0_46 = arith.constant 0 : index
    %c0_47 = arith.constant 0 : index
    %116 = vector.load %arg7[%c0_46, %c0_47] : memref<16x128xf32, #tpu.memory_space<vmem>>, vector<16x128xf32>
    %c0_48 = arith.constant 0 : index
    %c0_49 = arith.constant 0 : index
    %117 = vector.load %arg6[%c0_48, %c0_49] : memref<16x128xf32, #tpu.memory_space<vmem>>, vector<16x128xf32>
    tpu.vector_store %arg6[%c0_48, %c0_49], %116 {strides = array<i32>} : memref<16x128xf32, #tpu.memory_space<vmem>>, vector<16x128xf32>,
    return
  }
  func.func @transform_0(%arg0: i32) -> (i32, i32) {
    %c0_i32 = arith.constant 0 : i32
    %c0_i32_0 = arith.constant 0 : i32
    return %arg0, %c0_i32 : i32, i32
  }
  func.func @transform_1(%arg0: i32) -> (i32, i32) {
    %c0_i32 = arith.constant 0 : i32
    %c0_i32_0 = arith.constant 0 : i32
    %c0_i32_1 = arith.constant 0 : i32
    return %c0_i32, %c0_i32_0 : i32, i32
  }
  func.func @transform_2(%arg0: i32) -> (i32, i32) {
    %c0_i32 = arith.constant 0 : i32
    %c0_i32_0 = arith.constant 0 : i32
    %c0_i32_1 = arith.constant 0 : i32
    return %c0_i32, %c0_i32_0 : i32, i32
  }
  func.func @transform_3(%arg0: i32) -> (i32, i32, i32) {
    %c0_i32 = arith.constant 0 : i32
    %c0_i32_0 = arith.constant 0 : i32
    %c0_i32_1 = arith.constant 0 : i32
    %c0_i32_2 = arith.constant 0 : i32
    return %c0_i32, %c0_i32_0, %c0_i32_1 : i32, i32, i32
  }
  func.func @transform_4(%arg0: i32) -> (i32, i32, i32) {
    %c0_i32 = arith.constant 0 : i32
    %c0_i32_0 = arith.constant 0 : i32
    %c0_i32_1 = arith.constant 0 : i32
    %c0_i32_2 = arith.constant 0 : i32
    return %c0_i32, %c0_i32_0, %c0_i32_1 : i32, i32, i32
  }
  func.func @transform_5(%arg0: i32) -> (i32, i32) {
    %c0_i32 = arith.constant 0 : i32
    %c0_i32_0 = arith.constant 0 : i32
    return %arg0, %c0_i32 : i32, i32
  }
}

</mosaic_0001>

<llo_original>
// kernel: mlp_layer_forward.1
$region0: #{mlp_layer_forward.1}
  #allocation0 [shape = 'u32[]', space=smem, size = 0x4, offset = 0x4, fixed_abs, tag = 'smem constant byte address 0x4 - core index']
  #allocation1 [shape = 'u32[144,128]{1,0:T(1,128)}', space=vmem, size = 0x12000, scoped, tag = 'internal scratch']
  #allocation2 [shape = 'f32[16,128]{1,0:T(8,128)}', space=vmem, size = 0x2000, scoped, tag = 'scratch operand']
  %s0 = inlined_call_operand.vmem [shape: f32[16,128], index: 0, kind: input, shape index: {}]
  %s1 = inlined_call_operand.hbm [shape: f32[128,128], index: 1, kind: input, shape index: {}]
  %s2 = inlined_call_operand.vmem [shape: f32[8,128], index: 2, kind: input, shape index: {}]
  %s3 = inlined_call_operand.hbm [shape: f32[2,128,128], index: 3, kind: input, shape index: {}]
  %s4 = inlined_call_operand.vmem [shape: f32[2,8,128], index: 4, kind: input, shape index: {}]
  %s5 = inlined_call_operand.hbm [shape: f32[16,128], index: 5, kind: output, shape index: {}]
  %s6 = sld [smem:[#allocation0]]
  $region38: #{mlp_layer_forward.1} parent=0
    _
  %s8 = ssub.s32 1, %s6
  %s9 = scalar_select 0, %s8, %s6
  $region1: #{mlp_layer_forward.1} parent=0
    #allocation3 [shape = 'u8[65536]{0}', space=vmem, size = 0x10000, scoped, tag = 'input window, operand 1, single buffered']
    #allocation4 [shape = 's32[1]{0}', space=sflag, size = 0x4, scoped, tag = 'scoped memory for mlp_layer_forward.1']
    #allocation5 [shape = 's32[1]{0}', space=sflag, size = 0x4, scoped, tag = 'scoped memory for mlp_layer_forward.1']
    #allocation6 [shape = 'u8[131072]{0}', space=vmem, size = 0x20000, scoped, tag = 'input window, operand 3, single buffered']
    #allocation7 [shape = 's32[1]{0}', space=sflag, size = 0x4, scoped, tag = 'scoped memory for mlp_layer_forward.1']
    #allocation8 [shape = 'u8[8192]{0}', space=vmem, size = 0x2000, scoped, tag = 'output window, operand 0, single buffered']
    %10 = vsyncpa [#allocation4], 0
    %11 = vsyncpa [#allocation7], 0
    %12 = vsyncpa [#allocation5], 0
    // Predicated region
    $region2: #{mlp_layer_forward.1} parent=1 // pred_check
      _
    $region3: #{mlp_layer_forward.1} parent=1 // pred_check_branch
      %14 = sbr.rel (0) target = $region5
    $region4: #{mlp_layer_forward.1} parent=1 // pred_region
      _
    $region5: #{mlp_layer_forward.1} parent=1 // pred_fallthru
      _
    // Predicated region
    $region6: #{mlp_layer_forward.1} parent=1 // pred_check
      _
    $region7: #{mlp_layer_forward.1} parent=1 // pred_check_branch
      %16 = sbr.rel (0) target = $region9
    $region8: #{mlp_layer_forward.1} parent=1 // pred_region
      %s18 = ssub.s32 2048, 2048
      %19 = vsyncadd [#allocation4], %s18
      %s20 = sshll.u32 [#allocation3], 4
      %s21 = int_to_ptr.vmem [resolvable:$true] %s20
      %26 = dma.hbm_to_vmem [thread:$0]  %s1, 2048, %s21, [#allocation4], 128, 128, 8
    $region9: #{mlp_layer_forward.1} parent=1 // pred_fallthru
      _
    // Predicated region
    $region10: #{mlp_layer_forward.1} parent=1 // pred_check
      _
    $region11: #{mlp_layer_forward.1} parent=1 // pred_check_branch
      %28 = sbr.rel (0) target = $region13
    $region12: #{mlp_layer_forward.1} parent=1 // pred_region
      _
    $region13: #{mlp_layer_forward.1} parent=1 // pred_fallthru
      _
    // Predicated region
    $region14: #{mlp_layer_forward.1} parent=1 // pred_check
      _
    $region15: #{mlp_layer_forward.1} parent=1 // pred_check_branch
      %30 = sbr.rel (0) target = $region17
    $region16: #{mlp_layer_forward.1} parent=1 // pred_region
      %s32 = ssub.s32 4096, 4096
      %33 = vsyncadd [#allocation7], %s32
      %s34 = sshll.u32 [#allocation6], 4
      %s35 = int_to_ptr.vmem [resolvable:$true] %s34
      %40 = dma.hbm_to_vmem [thread:$0]  %s3, 4096, %s35, [#allocation7], 128, 128, 8
    $region17: #{mlp_layer_forward.1} parent=1 // pred_fallthru
      _
    // Predicated region
    $region18: #{mlp_layer_forward.1} parent=1 // pred_check
      _
    $region19: #{mlp_layer_forward.1} parent=1 // pred_check_branch
      %42 = sbr.rel (0) target = $region21
    $region20: #{mlp_layer_forward.1} parent=1 // pred_region
      _
    $region21: #{mlp_layer_forward.1} parent=1 // pred_fallthru
      _
    // Predicated region
    $region22: #{mlp_layer_forward.1} parent=1 // pred_check
      _
    $region23: #{mlp_layer_forward.1} parent=1 // pred_check_branch
      %44 = sbr.rel (0) target = $region25
    $region24: #{mlp_layer_forward.1} parent=1 // pred_region
      %45 = dma.done [#allocation4], 2048
    $region25: #{mlp_layer_forward.1} parent=1 // pred_fallthru
      _
    // Predicated region
    $region26: #{mlp_layer_forward.1} parent=1 // pred_check
      _
    $region27: #{mlp_layer_forward.1} parent=1 // pred_check_branch
      %47 = sbr.rel (0) target = $region29
    $region28: #{mlp_layer_forward.1} parent=1 // pred_region
      %48 = dma.done [#allocation7], 4096
    $region29: #{mlp_layer_forward.1} parent=1 // pred_fallthru
      _
    %v49 = vld [vmem:[%s0] sm:$0xff]
    %v50 = vld [vmem:[%s0 + $0x8] sm:$0xff]
    %v51 = vld [vmem:[#allocation3] sm:$0xff]
    %v52 = vld [vmem:[#allocation3 + $0x8] sm:$0xff]
    %v53 = vld [vmem:[#allocation3 + $0x10] sm:$0xff]
    %v54 = vld [vmem:[#allocation3 + $0x18] sm:$0xff]
    %v55 = vld [vmem:[#allocation3 + $0x20] sm:$0xff]
    %v56 = vld [vmem:[#allocation3 + $0x28] sm:$0xff]
    %v57 = vld [vmem:[#allocation3 + $0x30] sm:$0xff]
    %v58 = vld [vmem:[#allocation3 + $0x38] sm:$0xff]
    %v59 = vld [vmem:[#allocation3 + $0x40] sm:$0xff]
    %v60 = vld [vmem:[#allocation3 + $0x48] sm:$0xff]
    %v61 = vld [vmem:[#allocation3 + $0x50] sm:$0xff]
    %v62 = vld [vmem:[#allocation3 + $0x58] sm:$0xff]
    %v63 = vld [vmem:[#allocation3 + $0x60] sm:$0xff]
    %v64 = vld [vmem:[#allocation3 + $0x68] sm:$0xff]
    %v65 = vld [vmem:[#allocation3 + $0x70] sm:$0xff]
    %v66 = vld [vmem:[#allocation3 + $0x78] sm:$0xff]
    %v67 = vld [vmem:[%s2] sm:$0xff]
    %v68 = vlaneseq
    %v69 = vshrl.u32 %v68, 7
    %v70 = vsub.s32 0, %v69
    %v71 = vrot.slane %v67, %v70
    %72 = vmatprep.subr.mxu0 0.0
    %73 = vmatpush1.msra.mxu0 %v51
    %74 = vmatprep.subr.mxu0 0.0
    %75 = vmatpush1.msra.mxu0 %v52
    %76 = vmatprep.subr.mxu0 0.0
    %77 = vmatpush1.msra.mxu0 %v53
    %78 = vmatprep.subr.mxu0 0.0
    %79 = vmatpush1.msra.mxu0 %v54
    %80 = vmatprep.subr.mxu0 0.0
    %81 = vmatpush1.msra.mxu0 %v55
    %82 = vmatprep.subr.mxu0 0.0
    %83 = vmatpush1.msra.mxu0 %v56
    %84 = vmatprep.subr.mxu0 0.0
    %85 = vmatpush1.msra.mxu0 %v57
    %86 = vmatprep.subr.mxu0 0.0
    %87 = vmatpush1.msra.mxu0 %v58
    %88 = vmatprep.subr.mxu0 0.0
    %89 = vmatpush1.msra.mxu0 %v59
    %90 = vmatprep.subr.mxu0 0.0
    %91 = vmatpush1.msra.mxu0 %v60
    %92 = vmatprep.subr.mxu0 0.0
    %93 = vmatpush1.msra.mxu0 %v61
    %94 = vmatprep.subr.mxu0 0.0
    %95 = vmatpush1.msra.mxu0 %v62
    %96 = vmatprep.subr.mxu0 0.0
    %97 = vmatpush1.msra.mxu0 %v63
    %98 = vmatprep.subr.mxu0 0.0
    %99 = vmatpush1.msra.mxu0 %v64
    %100 = vmatprep.subr.mxu0 0.0
    %101 = vmatpush1.msra.mxu0 %v65
    %102 = vmatprep.subr.mxu0 0.0
    %103 = vmatpush1.msra.mxu0 %v66
    %104 = vmatprep.subr.mxu0 0.0
    %105 = vmatpush1.msra.mxu0 0.0
    %106 = vmatprep.subr.mxu0 0.0
    %107 = vmatpush1.msra.mxu0 0.0
    %108 = vmatprep.subr.mxu0 0.0
    %109 = vmatpush1.msra.mxu0 0.0
    %110 = vmatprep.subr.mxu0 0.0
    %111 = vmatpush1.msra.mxu0 0.0
    %112 = vmatprep.subr.mxu0 0.0
    %113 = vmatpush1.msra.mxu0 0.0
    %114 = vmatprep.subr.mxu0 0.0
    %115 = vmatpush1.msra.mxu0 0.0
    %116 = vmatprep.subr.mxu0 0.0
    %117 = vmatpush1.msra.mxu0 0.0
    %118 = vmatprep.subr.mxu0 0.0
    %119 = vmatpush1.msra.mxu0 0.0
    %120 = vmatprep.subr.mxu0 0.0
    %121 = vmatpush1.msra.mxu0 0.0
    %122 = vmatprep.subr.mxu0 0.0
    %123 = vmatpush1.msra.mxu0 0.0
    %124 = vmatprep.subr.mxu0 0.0
    %125 = vmatpush1.msra.mxu0 0.0
    %126 = vmatprep.subr.mxu0 0.0
    %127 = vmatpush1.msra.mxu0 0.0
    %128 = vmatprep.subr.mxu0 0.0
    %129 = vmatpush1.msra.mxu0 0.0
    %130 = vmatprep.subr.mxu0 0.0
    %131 = vmatpush1.msra.mxu0 0.0
    %132 = vmatprep.subr.mxu0 0.0
    %133 = vmatpush1.msra.mxu0 0.0
    %134 = vmatprep.subr.mxu0 0.0
    %135 = vmatpush1.msra.mxu0 0.0
    %136 = vmatprep.mubr.f32.mxu0 0.0
    %137 = vmatmul.mubr.f32.gmra.mrb[0].mxu0 %v49
    %v138 = vpop.f32.mrb[0].mxu0
    %v139 = vadd.f32 %v71, %v138
    %v140 = vpop.f32.mrb[0].mxu0
    %141 = vmatprep.mubr.f32.mxu0 0.0
    %142 = vmatmul.mubr.f32.gmra.mrb[0].mxu0 %v50
    %v143 = vpop.f32.mrb[0].mxu0
    %v144 = vadd.f32 %v71, %v143
    %v145 = vpop.f32.mrb[0].mxu0
    %146 = vdwg.mxu0
    %v147 = vmax.f32 %v139, 0.0
    %v148 = vmax.f32 %v144, 0.0
    %149 = vadd.xlane.f32.xlu0 %v147
    %v150 = vpop.xlane.xlu0 %149
    %151 = vadd.xlane.f32.xlu0 %v148
    %v152 = vpop.xlane.xlu0 %151
    %v153 = vmul.f32 %v147, %v147
    %v154 = vmul.f32 %v148, %v148
    %155 = vadd.xlane.f32.xlu0 %v153
    %v156 = vpop.xlane.xlu0 %155
    %157 = vadd.xlane.f32.xlu0 %v154
    %v158 = vpop.xlane.xlu0 %157
    %v159 = vmul.f32 %v150, 0.015625
    %v160 = vmul.f32 %v152, 0.015625
    %v161 = vmul.f32 %v156, 0.015625
    %v162 = vmul.f32 %v158, 0.015625
    %v163 = vmul.f32 %v159, %v159
    %v164 = vmul.f32 %v160, %v160
    %v165 = vsub.f32 %v161, %v163
    %v166 = vsub.f32 %v162, %v164
    %v167 = vmax.f32 %v165, 0.0
    %v168 = vmax.f32 %v166, 0.0
    %v169 = vsub.f32 %v147, %v159
    %v170 = vsub.f32 %v148, %v160
    %v171 = vadd.f32 %v167, 1e-05
    %v172 = vadd.f32 %v168, 1e-05
    %v173 = vrsqrt.pop %v171
    %v174 = vrsqrt.pop %v172
    %v175 = vmul.f32 %v169, %v173
    %v176 = vmul.f32 %v170, %v174
    %v177 = vlaneseq
    %v178 = vshrl.u32 %v177, 7
    %v179 = vsub.s32 1, %v178
    %v180 = vrot.slane %v67, %v179
    %v181 = vmul.f32 %v175, %v180
    %v182 = vmul.f32 %v176, %v180
    %v183 = vlaneseq
    %v184 = vshrl.u32 %v183, 7
    %v185 = vsub.s32 2, %v184
    %v186 = vrot.slane %v67, %v185
    %v187 = vadd.f32 %v181, %v186
    %v188 = vadd.f32 %v182, %v186
    %189 = vst [vmem:[#allocation2] sm:$0xff] %v187
    %190 = vst [vmem:[#allocation2 + $0x8] sm:$0xff] %v188
    %v191 = vld [vmem:[#allocation2] sm:$0xff]
    %v192 = vld [vmem:[#allocation2 + $0x8] sm:$0xff]
    %v193 = vld [vmem:[#allocation6] sm:$0xff]
    %v194 = vld [vmem:[#allocation6 + $0x8] sm:$0xff]
    %v195 = vld [vmem:[#allocation6 + $0x10] sm:$0xff]
    %v196 = vld [vmem:[#allocation6 + $0x18] sm:$0xff]
    %v197 = vld [vmem:[#allocation6 + $0x20] sm:$0xff]
    %v198 = vld [vmem:[#allocation6 + $0x28] sm:$0xff]
    %v199 = vld [vmem:[#allocation6 + $0x30] sm:$0xff]
    %v200 = vld [vmem:[#allocation6 + $0x38] sm:$0xff]
    %v201 = vld [vmem:[#allocation6 + $0x40] sm:$0xff]
    %v202 = vld [vmem:[#allocation6 + $0x48] sm:$0xff]
    %v203 = vld [vmem:[#allocation6 + $0x50] sm:$0xff]
    %v204 = vld [vmem:[#allocation6 + $0x58] sm:$0xff]
    %v205 = vld [vmem:[#allocation6 + $0x60] sm:$0xff]
    %v206 = vld [vmem:[#allocation6 + $0x68] sm:$0xff]
    %v207 = vld [vmem:[#allocation6 + $0x70] sm:$0xff]
    %v208 = vld [vmem:[#allocation6 + $0x78] sm:$0xff]
    %v209 = vld [vmem:[%s4] sm:$0xff]
    %v210 = vlaneseq
    %v211 = vshrl.u32 %v210, 7
    %v212 = vsub.s32 0, %v211
    %v213 = vrot.slane %v209, %v212
    %214 = vmatprep.subr.mxu0 0.0
    %215 = vmatpush1.msra.mxu0 %v193
    %216 = vmatprep.subr.mxu0 0.0
    %217 = vmatpush1.msra.mxu0 %v194
    %218 = vmatprep.subr.mxu0 0.0
    %219 = vmatpush1.msra.mxu0 %v195
    %220 = vmatprep.subr.mxu0 0.0
    %221 = vmatpush1.msra.mxu0 %v196
    %222 = vmatprep.subr.mxu0 0.0
    %223 = vmatpush1.msra.mxu0 %v197
    %224 = vmatprep.subr.mxu0 0.0
    %225 = vmatpush1.msra.mxu0 %v198
    %226 = vmatprep.subr.mxu0 0.0
    %227 = vmatpush1.msra.mxu0 %v199
    %228 = vmatprep.subr.mxu0 0.0
    %229 = vmatpush1.msra.mxu0 %v200
    %230 = vmatprep.subr.mxu0 0.0
    %231 = vmatpush1.msra.mxu0 %v201
    %232 = vmatprep.subr.mxu0 0.0
    %233 = vmatpush1.msra.mxu0 %v202
    %234 = vmatprep.subr.mxu0 0.0
    %235 = vmatpush1.msra.mxu0 %v203
    %236 = vmatprep.subr.mxu0 0.0
    %237 = vmatpush1.msra.mxu0 %v204
    %238 = vmatprep.subr.mxu0 0.0
    %239 = vmatpush1.msra.mxu0 %v205
    %240 = vmatprep.subr.mxu0 0.0
    %241 = vmatpush1.msra.mxu0 %v206
    %242 = vmatprep.subr.mxu0 0.0
    %243 = vmatpush1.msra.mxu0 %v207
    %244 = vmatprep.subr.mxu0 0.0
    %245 = vmatpush1.msra.mxu0 %v208
    %246 = vmatprep.subr.mxu0 0.0
    %247 = vmatpush1.msra.mxu0 0.0
    %248 = vmatprep.subr.mxu0 0.0
    %249 = vmatpush1.msra.mxu0 0.0
    %250 = vmatprep.subr.mxu0 0.0
    %251 = vmatpush1.msra.mxu0 0.0
    %252 = vmatprep.subr.mxu0 0.0
    %253 = vmatpush1.msra.mxu0 0.0
    %254 = vmatprep.subr.mxu0 0.0
    %255 = vmatpush1.msra.mxu0 0.0
    %256 = vmatprep.subr.mxu0 0.0
    %257 = vmatpush1.msra.mxu0 0.0
    %258 = vmatprep.subr.mxu0 0.0
    %259 = vmatpush1.msra.mxu0 0.0
    %260 = vmatprep.subr.mxu0 0.0
    %261 = vmatpush1.msra.mxu0 0.0
    %262 = vmatprep.subr.mxu0 0.0
    %263 = vmatpush1.msra.mxu0 0.0
    %264 = vmatprep.subr.mxu0 0.0
    %265 = vmatpush1.msra.mxu0 0.0
    %266 = vmatprep.subr.mxu0 0.0
    %267 = vmatpush1.msra.mxu0 0.0
    %268 = vmatprep.subr.mxu0 0.0
    %269 = vmatpush1.msra.mxu0 0.0
    %270 = vmatprep.subr.mxu0 0.0
    %271 = vmatpush1.msra.mxu0 0.0
    %272 = vmatprep.subr.mxu0 0.0
    %273 = vmatpush1.msra.mxu0 0.0
    %274 = vmatprep.subr.mxu0 0.0
    %275 = vmatpush1.msra.mxu0 0.0
    %276 = vmatprep.subr.mxu0 0.0
    %277 = vmatpush1.msra.mxu0 0.0
    %278 = vmatprep.mubr.f32.mxu0 0.0
    %279 = vmatmul.mubr.f32.gmra.mrb[0].mxu0 %v191
    %v280 = vpop.f32.mrb[0].mxu0
    %v281 = vadd.f32 %v213, %v280
    %v282 = vpop.f32.mrb[0].mxu0
    %283 = vmatprep.mubr.f32.mxu0 0.0
    %284 = vmatmul.mubr.f32.gmra.mrb[0].mxu0 %v192
    %v285 = vpop.f32.mrb[0].mxu0
    %v286 = vadd.f32 %v213, %v285
    %v287 = vpop.f32.mrb[0].mxu0
    %288 = vdwg.mxu0
    %v289 = vmax.f32 %v281, 0.0
    %v290 = vmax.f32 %v286, 0.0
    %291 = vadd.xlane.f32.xlu0 %v289
    %v292 = vpop.xlane.xlu0 %291
    %293 = vadd.xlane.f32.xlu0 %v290
    %v294 = vpop.xlane.xlu0 %293
    %v295 = vmul.f32 %v289, %v289
    %v296 = vmul.f32 %v290, %v290
    %297 = vadd.xlane.f32.xlu0 %v295
    %v298 = vpop.xlane.xlu0 %297
    %299 = vadd.xlane.f32.xlu0 %v296
    %v300 = vpop.xlane.xlu0 %299
    %v301 = vmul.f32 %v292, 0.015625
    %v302 = vmul.f32 %v294, 0.015625
    %v303 = vmul.f32 %v298, 0.015625
    %v304 = vmul.f32 %v300, 0.015625
    %v305 = vmul.f32 %v301, %v301
    %v306 = vmul.f32 %v302, %v302
    %v307 = vsub.f32 %v303, %v305
    %v308 = vsub.f32 %v304, %v306
    %v309 = vmax.f32 %v307, 0.0
    %v310 = vmax.f32 %v308, 0.0
    %v311 = vsub.f32 %v289, %v301
    %v312 = vsub.f32 %v290, %v302
    %v313 = vadd.f32 %v309, 1e-05
    %v314 = vadd.f32 %v310, 1e-05
    %v315 = vrsqrt.pop %v313
    %v316 = vrsqrt.pop %v314
    %v317 = vmul.f32 %v311, %v315
    %v318 = vmul.f32 %v312, %v316
    %v319 = vlaneseq
    %v320 = vshrl.u32 %v319, 7
    %v321 = vsub.s32 1, %v320
    %v322 = vrot.slane %v209, %v321
    %v323 = vmul.f32 %v317, %v322
    %v324 = vmul.f32 %v318, %v322
    %v325 = vlaneseq
    %v326 = vshrl.u32 %v325, 7
    %v327 = vsub.s32 2, %v326
    %v328 = vrot.slane %v209, %v327
    %v329 = vadd.f32 %v323, %v328
    %v330 = vadd.f32 %v324, %v328
    %331 = vst [vmem:[#allocation2] sm:$0xff] %v329
    %332 = vst [vmem:[#allocation2 + $0x8] sm:$0xff] %v330
    %v333 = vld [vmem:[#allocation2] sm:$0xff]
    %v334 = vld [vmem:[#allocation2 + $0x8] sm:$0xff]
    %s335 = scalar_lea.vmem [#allocation6], 128
    %v336 = vld [vmem:[%s335] sm:$0xff]
    %v337 = vld [vmem:[%s335 + $0x8] sm:$0xff]
    %v338 = vld [vmem:[%s335 + $0x10] sm:$0xff]
    %v339 = vld [vmem:[%s335 + $0x18] sm:$0xff]
    %v340 = vld [vmem:[%s335 + $0x20] sm:$0xff]
    %v341 = vld [vmem:[%s335 + $0x28] sm:$0xff]
    %v342 = vld [vmem:[%s335 + $0x30] sm:$0xff]
    %v343 = vld [vmem:[%s335 + $0x38] sm:$0xff]
    %v344 = vld [vmem:[%s335 + $0x40] sm:$0xff]
    %v345 = vld [vmem:[%s335 + $0x48] sm:$0xff]
    %v346 = vld [vmem:[%s335 + $0x50] sm:$0xff]
    %v347 = vld [vmem:[%s335 + $0x58] sm:$0xff]
    %v348 = vld [vmem:[%s335 + $0x60] sm:$0xff]
    %v349 = vld [vmem:[%s335 + $0x68] sm:$0xff]
    %v350 = vld [vmem:[%s335 + $0x70] sm:$0xff]
    %v351 = vld [vmem:[%s335 + $0x78] sm:$0xff]
    %s352 = scalar_lea.vmem %s4, 8
    %v353 = vld [vmem:[%s352] sm:$0xff]
    %v354 = vlaneseq
    %v355 = vshrl.u32 %v354, 7
    %v356 = vsub.s32 0, %v355
    %v357 = vrot.slane %v353, %v356
    %358 = vmatprep.subr.mxu0 0.0
    %359 = vmatpush1.msra.mxu0 %v336
    %360 = vmatprep.subr.mxu0 0.0
    %361 = vmatpush1.msra.mxu0 %v337
    %362 = vmatprep.subr.mxu0 0.0
    %363 = vmatpush1.msra.mxu0 %v338
    %364 = vmatprep.subr.mxu0 0.0
    %365 = vmatpush1.msra.mxu0 %v339
    %366 = vmatprep.subr.mxu0 0.0
    %367 = vmatpush1.msra.mxu0 %v340
    %368 = vmatprep.subr.mxu0 0.0
    %369 = vmatpush1.msra.mxu0 %v341
    %370 = vmatprep.subr.mxu0 0.0
    %371 = vmatpush1.msra.mxu0 %v342
    %372 = vmatprep.subr.mxu0 0.0
    %373 = vmatpush1.msra.mxu0 %v343
    %374 = vmatprep.subr.mxu0 0.0
    %375 = vmatpush1.msra.mxu0 %v344
    %376 = vmatprep.subr.mxu0 0.0
    %377 = vmatpush1.msra.mxu0 %v345
    %378 = vmatprep.subr.mxu0 0.0
    %379 = vmatpush1.msra.mxu0 %v346
    %380 = vmatprep.subr.mxu0 0.0
    %381 = vmatpush1.msra.mxu0 %v347
    %382 = vmatprep.subr.mxu0 0.0
    %383 = vmatpush1.msra.mxu0 %v348
    %384 = vmatprep.subr.mxu0 0.0
    %385 = vmatpush1.msra.mxu0 %v349
    %386 = vmatprep.subr.mxu0 0.0
    %387 = vmatpush1.msra.mxu0 %v350
    %388 = vmatprep.subr.mxu0 0.0
    %389 = vmatpush1.msra.mxu0 %v351
    %390 = vmatprep.subr.mxu0 0.0
    %391 = vmatpush1.msra.mxu0 0.0
    %392 = vmatprep.subr.mxu0 0.0
    %393 = vmatpush1.msra.mxu0 0.0
    %394 = vmatprep.subr.mxu0 0.0
    %395 = vmatpush1.msra.mxu0 0.0
    %396 = vmatprep.subr.mxu0 0.0
    %397 = vmatpush1.msra.mxu0 0.0
    %398 = vmatprep.subr.mxu0 0.0
    %399 = vmatpush1.msra.mxu0 0.0
    %400 = vmatprep.subr.mxu0 0.0
    %401 = vmatpush1.msra.mxu0 0.0
    %402 = vmatprep.subr.mxu0 0.0
    %403 = vmatpush1.msra.mxu0 0.0
    %404 = vmatprep.subr.mxu0 0.0
    %405 = vmatpush1.msra.mxu0 0.0
    %406 = vmatprep.subr.mxu0 0.0
    %407 = vmatpush1.msra.mxu0 0.0
    %408 = vmatprep.subr.mxu0 0.0
    %409 = vmatpush1.msra.mxu0 0.0
    %410 = vmatprep.subr.mxu0 0.0
    %411 = vmatpush1.msra.mxu0 0.0
    %412 = vmatprep.subr.mxu0 0.0
    %413 = vmatpush1.msra.mxu0 0.0
    %414 = vmatprep.subr.mxu0 0.0
    %415 = vmatpush1.msra.mxu0 0.0
    %416 = vmatprep.subr.mxu0 0.0
    %417 = vmatpush1.msra.mxu0 0.0
    %418 = vmatprep.subr.mxu0 0.0
    %419 = vmatpush1.msra.mxu0 0.0
    %420 = vmatprep.subr.mxu0 0.0
    %421 = vmatpush1.msra.mxu0 0.0
    %422 = vmatprep.mubr.f32.mxu0 0.0
    %423 = vmatmul.mubr.f32.gmra.mrb[0].mxu0 %v333
    %v424 = vpop.f32.mrb[0].mxu0
    %v425 = vadd.f32 %v357, %v424
    %v426 = vpop.f32.mrb[0].mxu0
    %427 = vmatprep.mubr.f32.mxu0 0.0
    %428 = vmatmul.mubr.f32.gmra.mrb[0].mxu0 %v334
    %v429 = vpop.f32.mrb[0].mxu0
    %v430 = vadd.f32 %v357, %v429
    %v431 = vpop.f32.mrb[0].mxu0
    %432 = vdwg.mxu0
    %v433 = vmax.f32 %v425, 0.0
    %v434 = vmax.f32 %v430, 0.0
    %435 = vadd.xlane.f32.xlu0 %v433
    %v436 = vpop.xlane.xlu0 %435
    %437 = vadd.xlane.f32.xlu0 %v434
    %v438 = vpop.xlane.xlu0 %437
    %v439 = vmul.f32 %v433, %v433
    %v440 = vmul.f32 %v434, %v434
    %441 = vadd.xlane.f32.xlu0 %v439
    %v442 = vpop.xlane.xlu0 %441
    %443 = vadd.xlane.f32.xlu0 %v440
    %v444 = vpop.xlane.xlu0 %443
    %v445 = vmul.f32 %v436, 0.015625
    %v446 = vmul.f32 %v438, 0.015625
    %v447 = vmul.f32 %v442, 0.015625
    %v448 = vmul.f32 %v444, 0.015625
    %v449 = vmul.f32 %v445, %v445
    %v450 = vmul.f32 %v446, %v446
    %v451 = vsub.f32 %v447, %v449
    %v452 = vsub.f32 %v448, %v450
    %v453 = vmax.f32 %v451, 0.0
    %v454 = vmax.f32 %v452, 0.0
    %v455 = vsub.f32 %v433, %v445
    %v456 = vsub.f32 %v434, %v446
    %v457 = vadd.f32 %v453, 1e-05
    %v458 = vadd.f32 %v454, 1e-05
    %v459 = vrsqrt.pop %v457
    %v460 = vrsqrt.pop %v458
    %v461 = vmul.f32 %v455, %v459
    %v462 = vmul.f32 %v456, %v460
    %v463 = vlaneseq
    %v464 = vshrl.u32 %v463, 7
    %v465 = vsub.s32 1, %v464
    %v466 = vrot.slane %v353, %v465
    %v467 = vmul.f32 %v461, %v466
    %v468 = vmul.f32 %v462, %v466
    %v469 = vlaneseq
    %v470 = vshrl.u32 %v469, 7
    %v471 = vsub.s32 2, %v470
    %v472 = vrot.slane %v353, %v471
    %v473 = vadd.f32 %v467, %v472
    %v474 = vadd.f32 %v468, %v472
    %475 = vst [vmem:[#allocation2] sm:$0xff] %v473
    %476 = vst [vmem:[#allocation2 + $0x8] sm:$0xff] %v474
    %v477 = vld [vmem:[#allocation2] sm:$0xff]
    %v478 = vld [vmem:[#allocation2 + $0x8] sm:$0xff]
    %479 = vst [vmem:[#allocation8] sm:$0xff] %v477
    %480 = vst [vmem:[#allocation8 + $0x8] sm:$0xff] %v478
    // Predicated region
    $region30: #{mlp_layer_forward.1} parent=1 // pred_check
      _
    $region31: #{mlp_layer_forward.1} parent=1 // pred_check_branch
      %482 = sbr.rel (0) target = $region33
    $region32: #{mlp_layer_forward.1} parent=1 // pred_region
      %s484 = ssub.s32 256, 256
      %485 = vsyncadd [#allocation5], %s484
      %s486 = sshll.u32 [#allocation8], 4
      %s487 = int_to_ptr.vmem [resolvable:$true] %s486
      %492 = dma.vmem_to_hbm [thread:$0]  %s487, 256, %s5, [#allocation5], 128, 128, 8
    $region33: #{mlp_layer_forward.1} parent=1 // pred_fallthru
      _
    // Predicated region
    $region34: #{mlp_layer_forward.1} parent=1 // pred_check
      _
    $region35: #{mlp_layer_forward.1} parent=1 // pred_check_branch
      %494 = sbr.rel (0) target = $region37
    $region36: #{mlp_layer_forward.1} parent=1 // pred_region
      %495 = dma.done [#allocation5], 256
    $region37: #{mlp_layer_forward.1} parent=1 // pred_fallthru
      _
    %496 = vsyncpa [#allocation4], 1
    %497 = vsyncpa [#allocation7], 1
    %498 = vsyncpa [#allocation5], 1

</llo_original>
